<compile_context>
chip_gen: v5e
topology: v5e:2x2
jax: 0.10.0
libtpu: 0.0.40
codegen_flags: <defaults>
</compile_context>

<pallas_src>
import jax
import jax.numpy as jnp
from jax.experimental import pallas as pl
from jax.experimental.pallas import tpu as pltpu


def mlp_kernel(x_ref, w1_ref, b1_ref, w2_ref, b2_ref, o_ref):
    # ---- Layer 1: [TM, D] @ [D, H] on the MXU (bf16 operands, f32 accumulate) ----
    x = x_ref[...].astype(jnp.bfloat16)  # no-op if the caller already streams bf16
    h = jnp.dot(x, w1_ref[...], preferred_element_type=jnp.float32)
    h = jnp.maximum(h + b1_ref[...], 0.0)  # bias broadcast [1, H] + ReLU (VPU)

    # ---- Layer 2: N=1 matmul done as VPU multiply + XLU lane reduce (f32) --------
    # w2 is lane-dense as a [1, H] row, so this runs on units that are idle while
    # the MXU / x-DMA works on the next tile's layer 1.
    o = jnp.sum(h * w2_ref[...], axis=-1, keepdims=True)  # [TM, 1] f32
    o_ref[...] = (o + b2_ref[0, 0]).astype(o_ref.dtype)   # scalar bias from SMEM


def _round_up(n, m):
    return ((n + m - 1) // m) * m


def _pick_batch_tile(batch, tm_max=1024):
    """Batch tile: big enough to amortize per-grid-step overhead, multiple of 256
    to match the 256x256 MXU on v6e/v7x, capped near ceil(B/2) so the "parallel"
    batch axis gives both v7x TensorCores work, and never (much) larger than the
    batch itself. Must stay a multiple of 8 for the sublane constraint.
    """
    # TODO(synk): on v7x specifically, raising tm_max to 2048-4096 amortizes the
    # per-step overhead further (3.2 TB/s HBM); 1024 is the sweet spot for v5e/v6e.
    tm = _round_up(max(batch // 2, 1), 256)
    tm = min(tm, tm_max, _round_up(batch, 8))
    return max(tm, 8)


def aesthetic_predictor(x, w1, b1, w2, b2, *, tm=None):
    """Forward pass of Linear(D->H) -> ReLU -> Linear(H->1).

    x: [B, D] float32 or bfloat16 (bf16 halves the dominant HBM read),
    w1: [D, H], b1: [1, H], w2: [H, 1], b2: [1, 1] (float32).
    Returns [B, 1] float32 (matches the PyTorch module forward).
    """
    B, D = x.shape
    H = w1.shape[1]
    assert w1.shape == (D, H)
    assert b1.shape == (1, H)
    assert w2.shape == (H, 1)
    assert b2.shape == (1, 1)

    if tm is None:
        tm = _pick_batch_tile(B)
    num_blocks = pl.cdiv(B, tm)  # ragged last block handled by Pallas masking

    # bf16 weights for the layer-1 MXU matmul; layer 2 stays f32 on the VPU/XLU.
    w1_bf16 = w1.astype(jnp.bfloat16)
    w2_row = w2.reshape(1, H)  # lane-dense [1, H]

    # VMEM budget scales with the tile: double-buffered x + out tiles, the f32 h
    # intermediate, and the resident weights, with ~50% + 4 MiB slack.
    x_bytes = jnp.dtype(x.dtype).itemsize
    resident = D * H * 2 + 2 * H * 4 + 128          # w1 (bf16) + b1 + w2 row
    working = 2 * tm * D * x_bytes + 2 * tm * 4 + tm * H * 4
    vmem_limit = int(1.5 * (resident + working)) + (4 << 20)
    vmem_limit = max(16 << 20, min(vmem_limit, 48 << 20))  # <=48 MiB for v7x's 64 MiB

    out = pl.pallas_call(
        mlp_kernel,
        out_shape=jax.ShapeDtypeStruct((B, 1), jnp.float32),
        grid=(num_blocks,),
        in_specs=[
            pl.BlockSpec((tm, D), lambda i: (i, 0)),            # x tile (pipelined)
            pl.BlockSpec((D, H), lambda i: (0, 0)),             # w1 (resident)
            pl.BlockSpec((1, H), lambda i: (0, 0)),             # b1 (resident)
            pl.BlockSpec((1, H), lambda i: (0, 0)),             # w2 row (resident)
            pl.BlockSpec(memory_space=pltpu.MemorySpace.SMEM),  # b2 scalar
        ],
        out_specs=pl.BlockSpec((tm, 1), lambda i: (i, 0)),
        compiler_params=pltpu.CompilerParams(
            dimension_semantics=("parallel",),  # shard batch tiles across TCs (v7x)
            vmem_limit_bytes=vmem_limit,
        ),
    )(x, w1_bf16, b1, w2_row, b2)

    return out


def init_params(key, input_dim=512, hidden=256):
    """Deterministic synthetic parameters (same shapes as the PyTorch module)."""
    k1, k2, k3, k4 = jax.random.split(key, 4)
    w1 = jax.random.uniform(k1, (input_dim, hidden), jnp.float32,
                            minval=-1.0, maxval=1.0) / jnp.sqrt(input_dim)
    b1 = jax.random.uniform(k2, (1, hidden), jnp.float32,
                            minval=-1.0, maxval=1.0) / jnp.sqrt(input_dim)
    w2 = jax.random.uniform(k3, (hidden, 1), jnp.float32,
                            minval=-1.0, maxval=1.0) / jnp.sqrt(hidden)
    b2 = jax.random.uniform(k4, (1, 1), jnp.float32,
                            minval=-1.0, maxval=1.0) / jnp.sqrt(hidden)
    return w1, b1, w2, b2


if __name__ == "__main__":
    INPUT_DIM = 512  # module default
    HIDDEN = 256
    BATCH = 10       # deliberately not tile-aligned: exercises the ragged last block

    key = jax.random.PRNGKey(0)
    kx, kp = jax.random.split(key)
    x = jax.random.normal(kx, (BATCH, INPUT_DIM), jnp.float32)
    w1, b1, w2, b2 = init_params(kp, INPUT_DIM, HIDDEN)

    out = aesthetic_predictor(x, w1, b1, w2, b2)
    out = jax.block_until_ready(out)

    # Pure-JAX f32 reference of the forward-pass semantics.
    # Tolerance loosened because layer 1 runs in bf16 on the MXU.
    ref = jnp.maximum(x @ w1 + b1, 0.0) @ w2 + b2
    assert out.shape == (BATCH, 1)
    assert jnp.allclose(out, ref, atol=2e-2, rtol=2e-2)

    print("KERNEL_OK")
</pallas_src>

<mosaic_0001>
module attributes {stable_mosaic.version = 11 : i64} {
  func.func @mlp_kernel(%arg0: i32, %arg1: memref<16x512xf32, #tpu.memory_space<vmem>>, %arg2: memref<512x256xbf16, #tpu.memory_space<vmem>>, %arg3: memref<1x256xf32, #tpu.memory_space<vmem>>, %arg4: memref<1x256xf32, #tpu.memory_space<vmem>>, %arg5: memref<1x1xf32, #tpu.memory_space<smem>>, %arg6: memref<16x1xf32, #tpu.memory_space<vmem>>) attributes {dimension_semantics = [#tpu.dimension_semantics<parallel>], iteration_bounds = array<i64: 1>, scalar_prefetch = 0 : i64, scratch_operands = 0 : i64, tpu.core_type = #tpu.core_type<tc>, window_params = [{transform_indices = @transform_0, window_bounds = array<i64: 16, 512>}, {pipeline_mode = #tpu.pipeline_mode<synchronous>, transform_indices = @transform_1, window_bounds = array<i64: 512, 256>}, {pipeline_mode = #tpu.pipeline_mode<synchronous>, transform_indices = @transform_2, window_bounds = array<i64: 1, 256>}, {pipeline_mode = #tpu.pipeline_mode<synchronous>, transform_indices = @transform_3, window_bounds = array<i64: 1, 256>}, {transform_indices = @transform_4, window_bounds = array<i64: 1, 1>}, {transform_indices = @transform_5, window_bounds = array<i64: 16, 1>}]} {
    %c0 = arith.constant 0 : index
    %c0_0 = arith.constant 0 : index
    %0 = vector.load %arg1[%c0, %c0_0] : memref<16x512xf32, #tpu.memory_space<vmem>>, vector<16x512xf32>
    %1 = arith.truncf %0 : vector<16x512xf32> to vector<16x512xbf16>
    %c0_1 = arith.constant 0 : index
    %c0_2 = arith.constant 0 : index
    %2 = vector.load %arg2[%c0_1, %c0_2] : memref<512x256xbf16, #tpu.memory_space<vmem>>, vector<512x256xbf16>
    %cst = arith.constant dense<0.000000e+00> : vector<16x256xf32>
    %3 = tpu.matmul %1, %2, %cst {dimension_numbers = #tpu.dot_dimension_numbers<[1], [0], [0], [1], [0, 0, 1, 1], [], []>} : vector<16x512xbf16>, vector<512x256xbf16>, vector<16x256xf32> -> vector<16x256xf32>
    %c0_3 = arith.constant 0 : index
    %c0_4 = arith.constant 0 : index
    %4 = vector.load %arg3[%c0_3, %c0_4] : memref<1x256xf32, #tpu.memory_space<vmem>>, vector<1x256xf32>
    %5 = vector.broadcast %4 : vector<1x256xf32> to vector<16x256xf32>
    %6 = arith.addf %3, %5 : vector<16x256xf32>
    %cst_5 = arith.constant 0.000000e+00 : f32
    %7 = vector.broadcast %cst_5 : f32 to vector<16x256xf32>
    %8 = arith.maximumf %6, %7 : vector<16x256xf32>
    %c0_6 = arith.constant 0 : index
    %c0_7 = arith.constant 0 : index
    %9 = vector.load %arg4[%c0_6, %c0_7] : memref<1x256xf32, #tpu.memory_space<vmem>>, vector<1x256xf32>
    %10 = vector.broadcast %9 : vector<1x256xf32> to vector<16x256xf32>
    %11 = arith.mulf %8, %10 : vector<16x256xf32>
    %cst_8 = arith.constant dense<0.000000e+00> : vector<16xf32>
    %12 = vector.multi_reduction <add>, %11, %cst_8 [1] : vector<16x256xf32> to vector<16xf32>
    %13 = vector.shape_cast %12 : vector<16xf32> to vector<16x1xf32>
    %c0_9 = arith.constant 0 : index
    %c0_10 = arith.constant 0 : index
    %14 = memref.load %arg5[%c0_9, %c0_10] : memref<1x1xf32, #tpu.memory_space<smem>>
    %15 = vector.broadcast %14 : f32 to vector<16x1xf32>
    %16 = arith.addf %13, %15 : vector<16x1xf32>
    %c0_11 = arith.constant 0 : index
    %c0_12 = arith.constant 0 : index
    %17 = vector.load %arg6[%c0_11, %c0_12] : memref<16x1xf32, #tpu.memory_space<vmem>>, vector<16x1xf32>
    tpu.vector_store %arg6[%c0_11, %c0_12], %16 {strides = array<i32>} : memref<16x1xf32, #tpu.memory_space<vmem>>, vector<16x1xf32>,
    return
  }
  func.func @transform_0(%arg0: i32) -> (i32, i32) {
    %c0_i32 = arith.constant 0 : i32
    %c0_i32_0 = arith.constant 0 : i32
    return %arg0, %c0_i32 : i32, i32
  }
  func.func @transform_1(%arg0: i32) -> (i32, i32) {
    %c0_i32 = arith.constant 0 : i32
    %c0_i32_0 = arith.constant 0 : i32
    %c0_i32_1 = arith.constant 0 : i32
    return %c0_i32, %c0_i32_0 : i32, i32
  }
  func.func @transform_2(%arg0: i32) -> (i32, i32) {
    %c0_i32 = arith.constant 0 : i32
    %c0_i32_0 = arith.constant 0 : i32
    %c0_i32_1 = arith.constant 0 : i32
    return %c0_i32, %c0_i32_0 : i32, i32
  }
  func.func @transform_3(%arg0: i32) -> (i32, i32) {
    %c0_i32 = arith.constant 0 : i32
    %c0_i32_0 = arith.constant 0 : i32
    %c0_i32_1 = arith.constant 0 : i32
    return %c0_i32, %c0_i32_0 : i32, i32
  }
  func.func @transform_4(%arg0: i32) -> (i32, i32) {
    %c0_i32 = arith.constant 0 : i32
    %c0_i32_0 = arith.constant 0 : i32
    %c0_i32_1 = arith.constant 0 : i32
    return %c0_i32, %c0_i32_0 : i32, i32
  }
  func.func @transform_5(%arg0: i32) -> (i32, i32) {
    %c0_i32 = arith.constant 0 : i32
    %c0_i32_0 = arith.constant 0 : i32
    return %arg0, %c0_i32 : i32, i32
  }
}

</mosaic_0001>

<llo_original>
// kernel: tpu_custom_call.1
$region0: #{tpu_custom_call.1}
  #allocation0 [shape = 'u32[]', space=smem, size = 0x4, offset = 0x4, fixed_abs, tag = 'smem constant byte address 0x4 - core index']
  #allocation1 [shape = 'u32[72,128]{1,0:T(1,128)}', space=vmem, size = 0x9000, scoped, tag = 'internal scratch']
  #allocation2 [shape = 'f32[1,1]{1,0:T(1,128)S(6)}', space=smem, size = 0x200, scoped, tag = 'scoped memory for tpu_custom_call.1']
  %s0 = inlined_call_operand.hbm [shape: f32[10,512], index: 0, kind: input, shape index: {}]
  %s1 = inlined_call_operand.hbm [shape: bf16[512,256], index: 1, kind: input, shape index: {}]
  %s2 = inlined_call_operand.vmem [shape: f32[1,256], index: 2, kind: input, shape index: {}]
  %s3 = inlined_call_operand.vmem [shape: f32[1,256], index: 3, kind: input, shape index: {}]
  %s4 = inlined_call_operand.<no memory space> [shape: f32[1,1], index: 4, kind: input, shape index: {}]
  %s5 = inlined_call_operand.vmem [shape: f32[10,1], index: 5, kind: output, shape index: {}]
  %s6 = sld [smem:[#allocation0]]
  $region38: #{tpu_custom_call.1} parent=0
    _
  %s8 = ssub.s32 1, %s6
  %s9 = scalar_select 0, %s8, %s6
  %10 = sst [smem:[#allocation2]] %s4
  $region1: #{tpu_custom_call.1} parent=0
    #allocation3 [shape = 'u8[32768]{0}', space=vmem, size = 0x8000, scoped, tag = 'input window, operand 0, single buffered']
    #allocation4 [shape = 's32[1]{0}', space=sflag, size = 0x4, scoped, tag = 'scoped memory for tpu_custom_call.1']
    #allocation5 [shape = 'u8[262144]{0}', space=vmem, size = 0x40000, scoped, tag = 'input window, operand 1, single buffered']
    #allocation6 [shape = 's32[1]{0}', space=sflag, size = 0x4, scoped, tag = 'scoped memory for tpu_custom_call.1']
    %11 = vsyncpa [#allocation4], 0
    %12 = vsyncpa [#allocation6], 0
    // Predicated region
    $region2: #{tpu_custom_call.1} parent=1 // pred_check
      _
    $region3: #{tpu_custom_call.1} parent=1 // pred_check_branch
      %14 = sbr.rel (0) target = $region5
    $region4: #{tpu_custom_call.1} parent=1 // pred_region
      %16 = vsyncadd [#allocation4], 0
      %s17 = sshll.u32 %s0, 4
      %s18 = int_to_ptr.hbm [resolvable:$true] %s17
      %s19 = sshll.u32 [#allocation3], 4
      %s20 = int_to_ptr.vmem [resolvable:$true] %s19
      %25 = dma.hbm_to_vmem [thread:$0]  %s18, 1024, %s20, [#allocation4], 512, 512, 32
    $region5: #{tpu_custom_call.1} parent=1 // pred_fallthru
      _
    // Predicated region
    $region6: #{tpu_custom_call.1} parent=1 // pred_check
      _
    $region7: #{tpu_custom_call.1} parent=1 // pred_check_branch
      %27 = sbr.rel (0) target = $region9
    $region8: #{tpu_custom_call.1} parent=1 // pred_region
      %29 = vsyncadd [#allocation6], 0
      %s30 = sshll.u32 %s1, 4
      %s31 = int_to_ptr.hbm [resolvable:$true] %s30
      %s32 = sshll.u32 [#allocation5], 4
      %s33 = int_to_ptr.vmem [resolvable:$true] %s32
      %38 = dma.hbm_to_vmem [thread:$0]  %s31, 8192, %s33, [#allocation6], 128, 128, 8
    $region9: #{tpu_custom_call.1} parent=1 // pred_fallthru
      _
    // Predicated region
    $region10: #{tpu_custom_call.1} parent=1 // pred_check
      _
    $region11: #{tpu_custom_call.1} parent=1 // pred_check_branch
      %40 = sbr.rel (0) target = $region13
    $region12: #{tpu_custom_call.1} parent=1 // pred_region
      _
    $region13: #{tpu_custom_call.1} parent=1 // pred_fallthru
      _
    // Predicated region
    $region14: #{tpu_custom_call.1} parent=1 // pred_check
      _
    $region15: #{tpu_custom_call.1} parent=1 // pred_check_branch
      %42 = sbr.rel (0) target = $region17
    $region16: #{tpu_custom_call.1} parent=1 // pred_region
      _
    $region17: #{tpu_custom_call.1} parent=1 // pred_fallthru
      _
    // Predicated region
    $region18: #{tpu_custom_call.1} parent=1 // pred_check
      _
    $region19: #{tpu_custom_call.1} parent=1 // pred_check_branch
      %44 = sbr.rel (0) target = $region21
    $region20: #{tpu_custom_call.1} parent=1 // pred_region
      _
    $region21: #{tpu_custom_call.1} parent=1 // pred_fallthru
      _
    // Predicated region
    $region22: #{tpu_custom_call.1} parent=1 // pred_check
      _
    $region23: #{tpu_custom_call.1} parent=1 // pred_check_branch
      %46 = sbr.rel (0) target = $region25
    $region24: #{tpu_custom_call.1} parent=1 // pred_region
      %48 = dma.done [#allocation4], 1024
    $region25: #{tpu_custom_call.1} parent=1 // pred_fallthru
      _
    // Predicated region
    $region26: #{tpu_custom_call.1} parent=1 // pred_check
      _
    $region27: #{tpu_custom_call.1} parent=1 // pred_check_branch
      %50 = sbr.rel (0) target = $region29
    $region28: #{tpu_custom_call.1} parent=1 // pred_region
      %52 = dma.done [#allocation6], 8192
    $region29: #{tpu_custom_call.1} parent=1 // pred_fallthru
      _
    %v53 = vld [vmem:[#allocation3] sm:$0xff]
    %v54 = vld [vmem:[#allocation3 + $0x8] sm:$0xff]
    %v55 = vld [vmem:[#allocation3 + $0x10] sm:$0xff]
    %v56 = vld [vmem:[#allocation3 + $0x18] sm:$0xff]
    %v57 = vld [vmem:[#allocation3 + $0x20] sm:$0xff]
    %v58 = vld [vmem:[#allocation3 + $0x28] sm:$0xff]
    %v59 = vld [vmem:[#allocation3 + $0x30] sm:$0xff]
    %v60 = vld [vmem:[#allocation3 + $0x38] sm:$0xff]
    %v61 = vpack.c.bf16 %v57, %v53
    %v62 = vpack.c.bf16 %v58, %v54
    %v63 = vpack.c.bf16 %v59, %v55
    %v64 = vpack.c.bf16 %v60, %v56
    %v65 = vld [vmem:[#allocation5] sm:$0xff]
    %v66 = vld [vmem:[#allocation5 + $0x8] sm:$0xff]
    %v67 = vld [vmem:[#allocation5 + $0x10] sm:$0xff]
    %v68 = vld [vmem:[#allocation5 + $0x18] sm:$0xff]
    %v69 = vld [vmem:[#allocation5 + $0x20] sm:$0xff]
    %v70 = vld [vmem:[#allocation5 + $0x28] sm:$0xff]
    %v71 = vld [vmem:[#allocation5 + $0x30] sm:$0xff]
    %v72 = vld [vmem:[#allocation5 + $0x38] sm:$0xff]
    %v73 = vld [vmem:[#allocation5 + $0x40] sm:$0xff]
    %v74 = vld [vmem:[#allocation5 + $0x48] sm:$0xff]
    %v75 = vld [vmem:[#allocation5 + $0x50] sm:$0xff]
    %v76 = vld [vmem:[#allocation5 + $0x58] sm:$0xff]
    %v77 = vld [vmem:[#allocation5 + $0x60] sm:$0xff]
    %v78 = vld [vmem:[#allocation5 + $0x68] sm:$0xff]
    %v79 = vld [vmem:[#allocation5 + $0x70] sm:$0xff]
    %v80 = vld [vmem:[#allocation5 + $0x78] sm:$0xff]
    %v81 = vld [vmem:[#allocation5 + $0x80] sm:$0xff]
    %v82 = vld [vmem:[#allocation5 + $0x88] sm:$0xff]
    %v83 = vld [vmem:[#allocation5 + $0x90] sm:$0xff]
    %v84 = vld [vmem:[#allocation5 + $0x98] sm:$0xff]
    %v85 = vld [vmem:[#allocation5 + $0xa0] sm:$0xff]
    %v86 = vld [vmem:[#allocation5 + $0xa8] sm:$0xff]
    %v87 = vld [vmem:[#allocation5 + $0xb0] sm:$0xff]
    %v88 = vld [vmem:[#allocation5 + $0xb8] sm:$0xff]
    %v89 = vld [vmem:[#allocation5 + $0xc0] sm:$0xff]
    %v90 = vld [vmem:[#allocation5 + $0xc8] sm:$0xff]
    %v91 = vld [vmem:[#allocation5 + $0xd0] sm:$0xff]
    %v92 = vld [vmem:[#allocation5 + $0xd8] sm:$0xff]
    %v93 = vld [vmem:[#allocation5 + $0xe0] sm:$0xff]
    %v94 = vld [vmem:[#allocation5 + $0xe8] sm:$0xff]
    %v95 = vld [vmem:[#allocation5 + $0xf0] sm:$0xff]
    %v96 = vld [vmem:[#allocation5 + $0xf8] sm:$0xff]
    %v97 = vld [vmem:[#allocation5 + $0x100] sm:$0xff]
    %v98 = vld [vmem:[#allocation5 + $0x108] sm:$0xff]
    %v99 = vld [vmem:[#allocation5 + $0x110] sm:$0xff]
    %v100 = vld [vmem:[#allocation5 + $0x118] sm:$0xff]
    %v101 = vld [vmem:[#allocation5 + $0x120] sm:$0xff]
    %v102 = vld [vmem:[#allocation5 + $0x128] sm:$0xff]
    %v103 = vld [vmem:[#allocation5 + $0x130] sm:$0xff]
    %v104 = vld [vmem:[#allocation5 + $0x138] sm:$0xff]
    %v105 = vld [vmem:[#allocation5 + $0x140] sm:$0xff]
    %v106 = vld [vmem:[#allocation5 + $0x148] sm:$0xff]
    %v107 = vld [vmem:[#allocation5 + $0x150] sm:$0xff]
    %v108 = vld [vmem:[#allocation5 + $0x158] sm:$0xff]
    %v109 = vld [vmem:[#allocation5 + $0x160] sm:$0xff]
    %v110 = vld [vmem:[#allocation5 + $0x168] sm:$0xff]
    %v111 = vld [vmem:[#allocation5 + $0x170] sm:$0xff]
    %v112 = vld [vmem:[#allocation5 + $0x178] sm:$0xff]
    %v113 = vld [vmem:[#allocation5 + $0x180] sm:$0xff]
    %v114 = vld [vmem:[#allocation5 + $0x188] sm:$0xff]
    %v115 = vld [vmem:[#allocation5 + $0x190] sm:$0xff]
    %v116 = vld [vmem:[#allocation5 + $0x198] sm:$0xff]
    %v117 = vld [vmem:[#allocation5 + $0x1a0] sm:$0xff]
    %v118 = vld [vmem:[#allocation5 + $0x1a8] sm:$0xff]
    %v119 = vld [vmem:[#allocation5 + $0x1b0] sm:$0xff]
    %v120 = vld [vmem:[#allocation5 + $0x1b8] sm:$0xff]
    %v121 = vld [vmem:[#allocation5 + $0x1c0] sm:$0xff]
    %v122 = vld [vmem:[#allocation5 + $0x1c8] sm:$0xff]
    %v123 = vld [vmem:[#allocation5 + $0x1d0] sm:$0xff]
    %v124 = vld [vmem:[#allocation5 + $0x1d8] sm:$0xff]
    %v125 = vld [vmem:[#allocation5 + $0x1e0] sm:$0xff]
    %v126 = vld [vmem:[#allocation5 + $0x1e8] sm:$0xff]
    %v127 = vld [vmem:[#allocation5 + $0x1f0] sm:$0xff]
    %v128 = vld [vmem:[#allocation5 + $0x1f8] sm:$0xff]
    %v129 = vld [vmem:[%s2] sm:$0x3]
    %v131 = vperm.slane %v129, 0
    %v132 = vperm.slane %v129, 1
    %v199 = vunpack.c.l.b16 %v65
    %v200 = vunpack.c.h.b16 %v65
    %v201 = vunpack.c.l.b16 %v66
    %v202 = vunpack.c.h.b16 %v66
    %v203 = vunpack.c.l.b16 %v67
    %v204 = vunpack.c.h.b16 %v67
    %v205 = vunpack.c.l.b16 %v68
    %v206 = vunpack.c.h.b16 %v68
    %v207 = vunpack.c.l.b16 %v69
    %v208 = vunpack.c.h.b16 %v69
    %v209 = vunpack.c.l.b16 %v70
    %v210 = vunpack.c.h.b16 %v70
    %v211 = vunpack.c.l.b16 %v71
    %v212 = vunpack.c.h.b16 %v71
    %v213 = vunpack.c.l.b16 %v72
    %v214 = vunpack.c.h.b16 %v72
    %v215 = vunpack.c.l.b16 %v73
    %v216 = vunpack.c.h.b16 %v73
    %v217 = vunpack.c.l.b16 %v74
    %v218 = vunpack.c.h.b16 %v74
    %v219 = vunpack.c.l.b16 %v75
    %v220 = vunpack.c.h.b16 %v75
    %v221 = vunpack.c.l.b16 %v76
    %v222 = vunpack.c.h.b16 %v76
    %v223 = vunpack.c.l.b16 %v77
    %v224 = vunpack.c.h.b16 %v77
    %v225 = vunpack.c.l.b16 %v78
    %v226 = vunpack.c.h.b16 %v78
    %v227 = vunpack.c.l.b16 %v79
    %v228 = vunpack.c.h.b16 %v79
    %v229 = vunpack.c.l.b16 %v80
    %v230 = vunpack.c.h.b16 %v80
    %v231 = vunpack.c.l.b16 %v81
    %v232 = vunpack.c.h.b16 %v81
    %v233 = vunpack.c.l.b16 %v82
    %v234 = vunpack.c.h.b16 %v82
    %v235 = vunpack.c.l.b16 %v83
    %v236 = vunpack.c.h.b16 %v83
    %v237 = vunpack.c.l.b16 %v84
    %v238 = vunpack.c.h.b16 %v84
    %v239 = vunpack.c.l.b16 %v85
    %v240 = vunpack.c.h.b16 %v85
    %v241 = vunpack.c.l.b16 %v86
    %v242 = vunpack.c.h.b16 %v86
    %v243 = vunpack.c.l.b16 %v87
    %v244 = vunpack.c.h.b16 %v87
    %v245 = vunpack.c.l.b16 %v88
    %v246 = vunpack.c.h.b16 %v88
    %v247 = vunpack.c.l.b16 %v89
    %v248 = vunpack.c.h.b16 %v89
    %v249 = vunpack.c.l.b16 %v90
    %v250 = vunpack.c.h.b16 %v90
    %v251 = vunpack.c.l.b16 %v91
    %v252 = vunpack.c.h.b16 %v91
    %v253 = vunpack.c.l.b16 %v92
    %v254 = vunpack.c.h.b16 %v92
    %v255 = vunpack.c.l.b16 %v93
    %v256 = vunpack.c.h.b16 %v93
    %v257 = vunpack.c.l.b16 %v94
    %v258 = vunpack.c.h.b16 %v94
    %v259 = vunpack.c.l.b16 %v95
    %v260 = vunpack.c.h.b16 %v95
    %v261 = vunpack.c.l.b16 %v96
    %v262 = vunpack.c.h.b16 %v96
    %v263 = vunpack.c.l.b16 %v97
    %v264 = vunpack.c.h.b16 %v97
    %v265 = vunpack.c.l.b16 %v98
    %v266 = vunpack.c.h.b16 %v98
    %v267 = vunpack.c.l.b16 %v99
    %v268 = vunpack.c.h.b16 %v99
    %v269 = vunpack.c.l.b16 %v100
    %v270 = vunpack.c.h.b16 %v100
    %v271 = vunpack.c.l.b16 %v101
    %v272 = vunpack.c.h.b16 %v101
    %v273 = vunpack.c.l.b16 %v102
    %v274 = vunpack.c.h.b16 %v102
    %v275 = vunpack.c.l.b16 %v103
    %v276 = vunpack.c.h.b16 %v103
    %v277 = vunpack.c.l.b16 %v104
    %v278 = vunpack.c.h.b16 %v104
    %v279 = vunpack.c.l.b16 %v105
    %v280 = vunpack.c.h.b16 %v105
    %v281 = vunpack.c.l.b16 %v106
    %v282 = vunpack.c.h.b16 %v106
    %v283 = vunpack.c.l.b16 %v107
    %v284 = vunpack.c.h.b16 %v107
    %v285 = vunpack.c.l.b16 %v108
    %v286 = vunpack.c.h.b16 %v108
    %v287 = vunpack.c.l.b16 %v109
    %v288 = vunpack.c.h.b16 %v109
    %v289 = vunpack.c.l.b16 %v110
    %v290 = vunpack.c.h.b16 %v110
    %v291 = vunpack.c.l.b16 %v111
    %v292 = vunpack.c.h.b16 %v111
    %v293 = vunpack.c.l.b16 %v112
    %v294 = vunpack.c.h.b16 %v112
    %v295 = vunpack.c.l.b16 %v113
    %v296 = vunpack.c.h.b16 %v113
    %v297 = vunpack.c.l.b16 %v114
    %v298 = vunpack.c.h.b16 %v114
    %v299 = vunpack.c.l.b16 %v115
    %v300 = vunpack.c.h.b16 %v115
    %v301 = vunpack.c.l.b16 %v116
    %v302 = vunpack.c.h.b16 %v116
    %v303 = vunpack.c.l.b16 %v117
    %v304 = vunpack.c.h.b16 %v117
    %v305 = vunpack.c.l.b16 %v118
    %v306 = vunpack.c.h.b16 %v118
    %v307 = vunpack.c.l.b16 %v119
    %v308 = vunpack.c.h.b16 %v119
    %v309 = vunpack.c.l.b16 %v120
    %v310 = vunpack.c.h.b16 %v120
    %v311 = vunpack.c.l.b16 %v121
    %v312 = vunpack.c.h.b16 %v121
    %v313 = vunpack.c.l.b16 %v122
    %v314 = vunpack.c.h.b16 %v122
    %v315 = vunpack.c.l.b16 %v123
    %v316 = vunpack.c.h.b16 %v123
    %v317 = vunpack.c.l.b16 %v124
    %v318 = vunpack.c.h.b16 %v124
    %v319 = vunpack.c.l.b16 %v125
    %v320 = vunpack.c.h.b16 %v125
    %v321 = vunpack.c.l.b16 %v126
    %v322 = vunpack.c.h.b16 %v126
    %v323 = vunpack.c.l.b16 %v127
    %v324 = vunpack.c.h.b16 %v127
    %v325 = vunpack.c.l.b16 %v128
    %v326 = vunpack.c.h.b16 %v128
    %v327 = vpack.c.b16 %v201, %v199
    %v328 = vpack.c.b16 %v202, %v200
    %v329 = vpack.c.b16 %v205, %v203
    %v330 = vpack.c.b16 %v206, %v204
    %v331 = vpack.c.b16 %v209, %v207
    %v332 = vpack.c.b16 %v210, %v208
    %v333 = vpack.c.b16 %v213, %v211
    %v334 = vpack.c.b16 %v214, %v212
    %v335 = vpack.c.b16 %v217, %v215
    %v336 = vpack.c.b16 %v218, %v216
    %v337 = vpack.c.b16 %v221, %v219
    %v338 = vpack.c.b16 %v222, %v220
    %v339 = vpack.c.b16 %v225, %v223
    %v340 = vpack.c.b16 %v226, %v224
    %v341 = vpack.c.b16 %v229, %v227
    %v342 = vpack.c.b16 %v230, %v228
    %v343 = vpack.c.b16 %v233, %v231
    %v344 = vpack.c.b16 %v234, %v232
    %v345 = vpack.c.b16 %v237, %v235
    %v346 = vpack.c.b16 %v238, %v236
    %v347 = vpack.c.b16 %v241, %v239
    %v348 = vpack.c.b16 %v242, %v240
    %v349 = vpack.c.b16 %v245, %v243
    %v350 = vpack.c.b16 %v246, %v244
    %v351 = vpack.c.b16 %v249, %v247
    %v352 = vpack.c.b16 %v250, %v248
    %v353 = vpack.c.b16 %v253, %v251
    %v354 = vpack.c.b16 %v254, %v252
    %v355 = vpack.c.b16 %v257, %v255
    %v356 = vpack.c.b16 %v258, %v256
    %v357 = vpack.c.b16 %v261, %v259
    %v358 = vpack.c.b16 %v262, %v260
    %v359 = vpack.c.b16 %v265, %v263
    %v360 = vpack.c.b16 %v266, %v264
    %v361 = vpack.c.b16 %v269, %v267
    %v362 = vpack.c.b16 %v270, %v268
    %v363 = vpack.c.b16 %v273, %v271
    %v364 = vpack.c.b16 %v274, %v272
    %v365 = vpack.c.b16 %v277, %v275
    %v366 = vpack.c.b16 %v278, %v276
    %v367 = vpack.c.b16 %v281, %v279
    %v368 = vpack.c.b16 %v282, %v280
    %v369 = vpack.c.b16 %v285, %v283
    %v370 = vpack.c.b16 %v286, %v284
    %v371 = vpack.c.b16 %v289, %v287
    %v372 = vpack.c.b16 %v290, %v288
    %v373 = vpack.c.b16 %v293, %v291
    %v374 = vpack.c.b16 %v294, %v292
    %v375 = vpack.c.b16 %v297, %v295
    %v376 = vpack.c.b16 %v298, %v296
    %v377 = vpack.c.b16 %v301, %v299
    %v378 = vpack.c.b16 %v302, %v300
    %v379 = vpack.c.b16 %v305, %v303
    %v380 = vpack.c.b16 %v306, %v304
    %v381 = vpack.c.b16 %v309, %v307
    %v382 = vpack.c.b16 %v310, %v308
    %v383 = vpack.c.b16 %v313, %v311
    %v384 = vpack.c.b16 %v314, %v312
    %v385 = vpack.c.b16 %v317, %v315
    %v386 = vpack.c.b16 %v318, %v316
    %v387 = vpack.c.b16 %v321, %v319
    %v388 = vpack.c.b16 %v322, %v320
    %v389 = vpack.c.b16 %v325, %v323
    %v390 = vpack.c.b16 %v326, %v324
    %455 = vmatpush.bf16.msra.mxu0 %v341
    %456 = vmatpush.bf16.msra.mxu0 %v339
    %457 = vmatpush.bf16.msra.mxu0 %v337
    %458 = vmatpush.bf16.msra.mxu0 %v335
    %459 = vmatpush.bf16.msra.mxu0 %v333
    %460 = vmatpush.bf16.msra.mxu0 %v331
    %461 = vmatpush.bf16.msra.mxu0 %v329
    %462 = vmatpush.bf16.msra.mxu0 %v327
    %463 = vmatmul.bf16.gmra.mxu0 %v61
    %v464 = vpop.f32.mrf.mxu0
    %v465 = vadd.f32 %v131, %v464
    %v466 = vpop.f32.mrf.mxu0
    %v467 = vadd.f32 %v131, %v466
    %468 = vdwg.mxu0
    %469 = vmatpush.bf16.msra.mxu0 %v357
    %470 = vmatpush.bf16.msra.mxu0 %v355
    %471 = vmatpush.bf16.msra.mxu0 %v353
    %472 = vmatpush.bf16.msra.mxu0 %v351
    %473 = vmatpush.bf16.msra.mxu0 %v349
    %474 = vmatpush.bf16.msra.mxu0 %v347
    %475 = vmatpush.bf16.msra.mxu0 %v345
    %476 = vmatpush.bf16.msra.mxu0 %v343
    %477 = vmatmul.bf16.gmra.mxu0 %v62
    %v478 = vpop.f32.mrf.mxu0
    %v479 = vadd.f32 %v465, %v478
    %v480 = vpop.f32.mrf.mxu0
    %v481 = vadd.f32 %v467, %v480
    %482 = vdwg.mxu0
    %483 = vmatpush.bf16.msra.mxu0 %v373
    %484 = vmatpush.bf16.msra.mxu0 %v371
    %485 = vmatpush.bf16.msra.mxu0 %v369
    %486 = vmatpush.bf16.msra.mxu0 %v367
    %487 = vmatpush.bf16.msra.mxu0 %v365
    %488 = vmatpush.bf16.msra.mxu0 %v363
    %489 = vmatpush.bf16.msra.mxu0 %v361
    %490 = vmatpush.bf16.msra.mxu0 %v359
    %491 = vmatmul.bf16.gmra.mxu0 %v63
    %v492 = vpop.f32.mrf.mxu0
    %v493 = vadd.f32 %v479, %v492
    %v494 = vpop.f32.mrf.mxu0
    %v495 = vadd.f32 %v481, %v494
    %496 = vdwg.mxu0
    %497 = vmatpush.bf16.msra.mxu0 %v389
    %498 = vmatpush.bf16.msra.mxu0 %v387
    %499 = vmatpush.bf16.msra.mxu0 %v385
    %500 = vmatpush.bf16.msra.mxu0 %v383
    %501 = vmatpush.bf16.msra.mxu0 %v381
    %502 = vmatpush.bf16.msra.mxu0 %v379
    %503 = vmatpush.bf16.msra.mxu0 %v377
    %504 = vmatpush.bf16.msra.mxu0 %v375
    %505 = vmatmul.bf16.gmra.mxu0 %v64
    %v506 = vpop.f32.mrf.mxu0
    %v507 = vadd.f32 %v493, %v506
    %v508 = vpop.f32.mrf.mxu0
    %v509 = vadd.f32 %v495, %v508
    %510 = vdwg.mxu0
    %511 = vmatpush.bf16.msra.mxu0 %v342
    %512 = vmatpush.bf16.msra.mxu0 %v340
    %513 = vmatpush.bf16.msra.mxu0 %v338
    %514 = vmatpush.bf16.msra.mxu0 %v336
    %515 = vmatpush.bf16.msra.mxu0 %v334
    %516 = vmatpush.bf16.msra.mxu0 %v332
    %517 = vmatpush.bf16.msra.mxu0 %v330
    %518 = vmatpush.bf16.msra.mxu0 %v328
    %519 = vmatmul.bf16.gmra.mxu0 %v61
    %v520 = vpop.f32.mrf.mxu0
    %v521 = vadd.f32 %v132, %v520
    %v522 = vpop.f32.mrf.mxu0
    %v523 = vadd.f32 %v132, %v522
    %524 = vdwg.mxu0
    %525 = vmatpush.bf16.msra.mxu0 %v358
    %526 = vmatpush.bf16.msra.mxu0 %v356
    %527 = vmatpush.bf16.msra.mxu0 %v354
    %528 = vmatpush.bf16.msra.mxu0 %v352
    %529 = vmatpush.bf16.msra.mxu0 %v350
    %530 = vmatpush.bf16.msra.mxu0 %v348
    %531 = vmatpush.bf16.msra.mxu0 %v346
    %532 = vmatpush.bf16.msra.mxu0 %v344
    %533 = vmatmul.bf16.gmra.mxu0 %v62
    %v534 = vpop.f32.mrf.mxu0
    %v535 = vadd.f32 %v521, %v534
    %v536 = vpop.f32.mrf.mxu0
    %v537 = vadd.f32 %v523, %v536
    %538 = vdwg.mxu0
    %539 = vmatpush.bf16.msra.mxu0 %v374
    %540 = vmatpush.bf16.msra.mxu0 %v372
    %541 = vmatpush.bf16.msra.mxu0 %v370
    %542 = vmatpush.bf16.msra.mxu0 %v368
    %543 = vmatpush.bf16.msra.mxu0 %v366
    %544 = vmatpush.bf16.msra.mxu0 %v364
    %545 = vmatpush.bf16.msra.mxu0 %v362
    %546 = vmatpush.bf16.msra.mxu0 %v360
    %547 = vmatmul.bf16.gmra.mxu0 %v63
    %v548 = vpop.f32.mrf.mxu0
    %v549 = vadd.f32 %v535, %v548
    %v550 = vpop.f32.mrf.mxu0
    %v551 = vadd.f32 %v537, %v550
    %552 = vdwg.mxu0
    %553 = vmatpush.bf16.msra.mxu0 %v390
    %554 = vmatpush.bf16.msra.mxu0 %v388
    %555 = vmatpush.bf16.msra.mxu0 %v386
    %556 = vmatpush.bf16.msra.mxu0 %v384
    %557 = vmatpush.bf16.msra.mxu0 %v382
    %558 = vmatpush.bf16.msra.mxu0 %v380
    %559 = vmatpush.bf16.msra.mxu0 %v378
    %560 = vmatpush.bf16.msra.mxu0 %v376
    %561 = vmatmul.bf16.gmra.mxu0 %v64
    %v562 = vpop.f32.mrf.mxu0
    %v563 = vadd.f32 %v549, %v562
    %v564 = vpop.f32.mrf.mxu0
    %v565 = vadd.f32 %v551, %v564
    %566 = vdwg.mxu0
    %v567 = vmax.f32 %v507, 0.0
    %v568 = vmax.f32 %v563, 0.0
    %v569 = vmax.f32 %v509, 0.0
    %v570 = vmax.f32 %v565, 0.0
    %v571 = vld [vmem:[%s3] sm:$0x3]
    %v573 = vperm.slane %v571, 0
    %v574 = vperm.slane %v571, 1
    %v577 = vmul.f32 %v567, %v573
    %v578 = vmul.f32 %v568, %v574
    %v579 = vmul.f32 %v569, %v573
    %v580 = vmul.f32 %v570, %v574
    %v581 = vadd.f32 %v577, %v578
    %582 = vadd.xlane.f32.xlu0 %v581
    %v583 = vpop.xlane.xlu0 %582
    %v584 = vadd.f32 %v579, %v580
    %585 = vadd.xlane.f32.xlu0 %v584
    %v586 = vpop.xlane.xlu0 %585
    %s587 = sld [smem:[#allocation2]]
    %v588 = vstv %s587
    %v589 = vadd.f32 %v583, %v588
    %v590 = vadd.f32 %v586, %v588
    %vm591 = vcmask 7168
    %592 = vst.msk [vmem:[%s5] sm:$0xff] %vm591, %v589
    %593 = vst.msk [vmem:[%s5 + $0x8] sm:$0xff] %vm591, %v590
    // Predicated region
    $region30: #{tpu_custom_call.1} parent=1 // pred_check
      _
    $region31: #{tpu_custom_call.1} parent=1 // pred_check_branch
      %595 = sbr.rel (0) target = $region33
    $region32: #{tpu_custom_call.1} parent=1 // pred_region
      _
    $region33: #{tpu_custom_call.1} parent=1 // pred_fallthru
      _
    // Predicated region
    $region34: #{tpu_custom_call.1} parent=1 // pred_check
      _
    $region35: #{tpu_custom_call.1} parent=1 // pred_check_branch
      %597 = sbr.rel (0) target = $region37
    $region36: #{tpu_custom_call.1} parent=1 // pred_region
      _
    $region37: #{tpu_custom_call.1} parent=1 // pred_fallthru
      _
    %598 = vsyncpa [#allocation4], 1
    %599 = vsyncpa [#allocation6], 1

</llo_original>
